<compile_context>
chip_gen: v6e
topology: v6e:2x2x1
jax: 0.10.0
libtpu: 0.0.40
codegen_flags: <defaults>
</compile_context>

<pallas_src>
import jax
import jax.numpy as jnp
from jax.experimental import pallas as pl
from jax.experimental.pallas import tpu as pltpu

LANE = 128            # lanes per vreg (fast axis)
SUB = 8               # sublane granularity
MAX_TILE_R = 2048     # rows per grid step: 2048*128*4 B = 1 MiB per block
SMALL_B_FALLBACK = 1024  # below this, plain-jnp path (kernel overhead dominates)

D_IN, HIDDEN, D_OUT = 1, 4, 1
N_PARAMS = 16         # 4 (w1) + 4 (b1) + 4 (w2) + 1 (b2), padded to 16


def _round_up(x, m):
    return ((x + m - 1) // m) * m


def _mlp_kernel(params_ref, z_ref, o_ref):
    # params_ref: (16,) f32 in SMEM  [w1_0..3, b1_0..3, w2_0..3, b2, pad...]
    # z_ref:      (TILE_R, 128) f32 lane-dense batch slab
    # o_ref:      (TILE_R, 128) f32 lane-dense output slab
    z = z_ref[...]
    # Tap 0 folds b2 into the accumulator (saves the zero-init + final add).
    acc = (jnp.maximum(z * params_ref[0] + params_ref[HIDDEN], 0.0)
           * params_ref[2 * HIDDEN] + params_ref[3 * HIDDEN])
    for j in range(1, HIDDEN):                                  # unrolled taps
        acc = acc + (jnp.maximum(z * params_ref[j] + params_ref[HIDDEN + j], 0.0)
                     * params_ref[2 * HIDDEN + j])
    o_ref[...] = acc


def pack_params(w1, b1, w2, b2):
    """Pack the 13 real parameters into one (16,) f32 SMEM-friendly vector.

    w1: (1, 4), b1: (4,), w2: (4, 1), b2: (1,)  -- (in, out) layout, i.e.
    PyTorch weight.T, so the math matches y = x @ W.T + b.
    Call once at init; reuse across forward calls.
    """
    real = D_IN * HIDDEN + HIDDEN + HIDDEN * D_OUT + D_OUT
    flat = jnp.concatenate([
        w1.reshape(-1).astype(jnp.float32),   # w1[0, 0..3]
        b1.reshape(-1).astype(jnp.float32),   # b1[0..3]
        w2.reshape(-1).astype(jnp.float32),   # w2[0..3, 0]
        b2.reshape(-1).astype(jnp.float32),   # b2
        jnp.zeros((N_PARAMS - real,), jnp.float32),
    ])
    return flat


def _choose_tile_r(rows):
    """Pick rows-per-block: pow2-bucketed, >=2 grid steps when enough work."""
    if rows > 2 * SUB:
        target = -(-rows // 2)        # at least 2 steps -> both v7x TCs get work
    else:
        target = rows
    target = _round_up(max(target, SUB), SUB)
    tile_r = SUB
    while tile_r < target:
        tile_r *= 2
    return min(tile_r, MAX_TILE_R)


def _small_forward(z, packed_params):
    """Plain-jnp path for tiny batches (XLA fusion is already optimal)."""
    w1 = packed_params[0:HIDDEN]
    b1 = packed_params[HIDDEN:2 * HIDDEN]
    w2 = packed_params[2 * HIDDEN:3 * HIDDEN]
    b2 = packed_params[3 * HIDDEN]
    zf = z.astype(jnp.float32)
    h = jnp.maximum(zf * w1[None, :] + b1[None, :], 0.0)
    return h @ w2.reshape(HIDDEN, D_OUT) + b2


def mlp_forward(z, packed_params, use_kernel=None):
    """z: (B, 1) f32, packed_params: (16,) f32  ->  (B, 1) f32."""
    B = z.shape[0]
    if use_kernel is None:
        use_kernel = B >= SMALL_B_FALLBACK
    if not use_kernel:
        return _small_forward(z, packed_params)

    flat = z.astype(jnp.float32).reshape(-1)           # (B,)  since D_IN == 1

    rows = max(1, -(-B // LANE))                        # ceil(B / 128)
    tile_r = _choose_tile_r(rows)
    rows_p = _round_up(rows, tile_r)
    total = rows_p * LANE

    if total == B:
        z_slab = flat.reshape(rows_p, LANE)             # pure reshape, no copy
    else:
        z_slab = jnp.pad(flat, (0, total - B)).reshape(rows_p, LANE)

    grid = (rows_p // tile_r,)

    out_slab = pl.pallas_call(
        _mlp_kernel,
        out_shape=jax.ShapeDtypeStruct((rows_p, LANE), jnp.float32),
        grid_spec=pltpu.PrefetchScalarGridSpec(
            num_scalar_prefetch=1,
            grid=grid,
            in_specs=[pl.BlockSpec((tile_r, LANE), lambda i, p: (i, 0))],
            out_specs=pl.BlockSpec((tile_r, LANE), lambda i, p: (i, 0)),
        ),
        compiler_params=pltpu.CompilerParams(
            dimension_semantics=("parallel",)),
        cost_estimate=pl.CostEstimate(
            flops=20 * total, transcendentals=0, bytes_accessed=8 * total),
    )(packed_params, z_slab)

    if total == B:
        return out_slab.reshape(B, D_OUT)               # pure reshape, no copy
    return out_slab.reshape(-1)[:B].reshape(B, D_OUT)


def init_params(key):
    """Params matching nn.Linear default init, stored as (in, out) == weight.T."""
    k1, k2, k3, k4 = jax.random.split(key, 4)
    bound1 = 1.0 / jnp.sqrt(D_IN)
    bound2 = 1.0 / jnp.sqrt(HIDDEN)
    w1 = jax.random.uniform(k1, (D_IN, HIDDEN), jnp.float32, -bound1, bound1)
    b1 = jax.random.uniform(k2, (HIDDEN,), jnp.float32, -bound1, bound1)
    w2 = jax.random.uniform(k3, (HIDDEN, D_OUT), jnp.float32, -bound2, bound2)
    b2 = jax.random.uniform(k4, (D_OUT,), jnp.float32, -bound2, bound2)
    return w1, b1, w2, b2


def _ref_forward(z, w1, b1, w2, b2):
    return jnp.maximum(z @ w1 + b1, 0.0) @ w2 + b2


if __name__ == "__main__":
    key = jax.random.PRNGKey(0)
    kz, kz2, kz3, kp = jax.random.split(key, 4)

    w1, b1, w2, b2 = init_params(kp)
    packed = pack_params(w1, b1, w2, b2)      # hoisted: packed once at init

    fwd = jax.jit(mlp_forward, static_argnames=("use_kernel",))

    # 1) Small batch: kernel forced on (exercises the Pallas path at tiny shapes).
    B = 8
    z = jax.random.normal(kz, (B, D_IN), jnp.float32)
    out = jax.block_until_ready(fwd(z, packed, use_kernel=True))
    ref = _ref_forward(z, w1, b1, w2, b2)
    assert out.shape == (B, D_OUT)
    assert jnp.allclose(out, ref, atol=1e-5, rtol=1e-5)

    # Same small batch via the auto path (plain-jnp fallback below threshold).
    out_fb = jax.block_until_ready(fwd(z, packed))
    assert jnp.allclose(out_fb, ref, atol=1e-5, rtol=1e-5)

    # 2) Ragged batch (non-multiple of 128): pad + slice path, kernel forced on.
    B2 = 300
    z2 = jax.random.normal(kz2, (B2, D_IN), jnp.float32)
    out2 = jax.block_until_ready(fwd(z2, packed, use_kernel=True))
    ref2 = _ref_forward(z2, w1, b1, w2, b2)
    assert out2.shape == (B2, D_OUT)
    assert jnp.allclose(out2, ref2, atol=1e-5, rtol=1e-5)

    # 3) Aligned batch: copy-free reshape in/out, >=2 grid steps (v7x megacore).
    B3 = 4096
    z3 = jax.random.normal(kz3, (B3, D_IN), jnp.float32)
    out3 = jax.block_until_ready(fwd(z3, packed))
    ref3 = _ref_forward(z3, w1, b1, w2, b2)
    assert out3.shape == (B3, D_OUT)
    assert jnp.allclose(out3, ref3, atol=1e-5, rtol=1e-5)

    print("KERNEL_OK")
</pallas_src>

<mosaic_0001>
module attributes {stable_mosaic.version = 11 : i64} {
  func.func @_mlp_kernel(%arg0: i32, %arg1: memref<16xf32, #tpu.memory_space<smem>>, %arg2: memref<8x128xf32, #tpu.memory_space<vmem>>, %arg3: memref<8x128xf32, #tpu.memory_space<vmem>>) attributes {dimension_semantics = [#tpu.dimension_semantics<parallel>], iteration_bounds = array<i64: 1>, scalar_prefetch = 1 : i64, scratch_operands = 0 : i64, tpu.core_type = #tpu.core_type<tc>, window_params = [{transform_indices = @transform_0, window_bounds = array<i64: 8, 128>}, {transform_indices = @transform_1, window_bounds = array<i64: 8, 128>}]} {
    %c0 = arith.constant 0 : index
    %c0_0 = arith.constant 0 : index
    %0 = vector.load %arg2[%c0, %c0_0] : memref<8x128xf32, #tpu.memory_space<vmem>>, vector<8x128xf32>
    %c0_1 = arith.constant 0 : index
    %1 = memref.load %arg1[%c0_1] : memref<16xf32, #tpu.memory_space<smem>>
    %2 = vector.broadcast %1 : f32 to vector<8x128xf32>
    %3 = arith.mulf %0, %2 : vector<8x128xf32>
    %c4 = arith.constant 4 : index
    %4 = memref.load %arg1[%c4] : memref<16xf32, #tpu.memory_space<smem>>
    %5 = vector.broadcast %4 : f32 to vector<8x128xf32>
    %6 = arith.addf %3, %5 : vector<8x128xf32>
    %cst = arith.constant 0.000000e+00 : f32
    %7 = vector.broadcast %cst : f32 to vector<8x128xf32>
    %8 = arith.maximumf %6, %7 : vector<8x128xf32>
    %c8 = arith.constant 8 : index
    %9 = memref.load %arg1[%c8] : memref<16xf32, #tpu.memory_space<smem>>
    %10 = vector.broadcast %9 : f32 to vector<8x128xf32>
    %11 = arith.mulf %8, %10 : vector<8x128xf32>
    %c12 = arith.constant 12 : index
    %12 = memref.load %arg1[%c12] : memref<16xf32, #tpu.memory_space<smem>>
    %13 = vector.broadcast %12 : f32 to vector<8x128xf32>
    %14 = arith.addf %11, %13 : vector<8x128xf32>
    %c1 = arith.constant 1 : index
    %15 = memref.load %arg1[%c1] : memref<16xf32, #tpu.memory_space<smem>>
    %16 = vector.broadcast %15 : f32 to vector<8x128xf32>
    %17 = arith.mulf %0, %16 : vector<8x128xf32>
    %c5 = arith.constant 5 : index
    %18 = memref.load %arg1[%c5] : memref<16xf32, #tpu.memory_space<smem>>
    %19 = vector.broadcast %18 : f32 to vector<8x128xf32>
    %20 = arith.addf %17, %19 : vector<8x128xf32>
    %cst_2 = arith.constant 0.000000e+00 : f32
    %21 = vector.broadcast %cst_2 : f32 to vector<8x128xf32>
    %22 = arith.maximumf %20, %21 : vector<8x128xf32>
    %c9 = arith.constant 9 : index
    %23 = memref.load %arg1[%c9] : memref<16xf32, #tpu.memory_space<smem>>
    %24 = vector.broadcast %23 : f32 to vector<8x128xf32>
    %25 = arith.mulf %22, %24 : vector<8x128xf32>
    %26 = arith.addf %14, %25 : vector<8x128xf32>
    %c2 = arith.constant 2 : index
    %27 = memref.load %arg1[%c2] : memref<16xf32, #tpu.memory_space<smem>>
    %28 = vector.broadcast %27 : f32 to vector<8x128xf32>
    %29 = arith.mulf %0, %28 : vector<8x128xf32>
    %c6 = arith.constant 6 : index
    %30 = memref.load %arg1[%c6] : memref<16xf32, #tpu.memory_space<smem>>
    %31 = vector.broadcast %30 : f32 to vector<8x128xf32>
    %32 = arith.addf %29, %31 : vector<8x128xf32>
    %cst_3 = arith.constant 0.000000e+00 : f32
    %33 = vector.broadcast %cst_3 : f32 to vector<8x128xf32>
    %34 = arith.maximumf %32, %33 : vector<8x128xf32>
    %c10 = arith.constant 10 : index
    %35 = memref.load %arg1[%c10] : memref<16xf32, #tpu.memory_space<smem>>
    %36 = vector.broadcast %35 : f32 to vector<8x128xf32>
    %37 = arith.mulf %34, %36 : vector<8x128xf32>
    %38 = arith.addf %26, %37 : vector<8x128xf32>
    %c3 = arith.constant 3 : index
    %39 = memref.load %arg1[%c3] : memref<16xf32, #tpu.memory_space<smem>>
    %40 = vector.broadcast %39 : f32 to vector<8x128xf32>
    %41 = arith.mulf %0, %40 : vector<8x128xf32>
    %c7 = arith.constant 7 : index
    %42 = memref.load %arg1[%c7] : memref<16xf32, #tpu.memory_space<smem>>
    %43 = vector.broadcast %42 : f32 to vector<8x128xf32>
    %44 = arith.addf %41, %43 : vector<8x128xf32>
    %cst_4 = arith.constant 0.000000e+00 : f32
    %45 = vector.broadcast %cst_4 : f32 to vector<8x128xf32>
    %46 = arith.maximumf %44, %45 : vector<8x128xf32>
    %c11 = arith.constant 11 : index
    %47 = memref.load %arg1[%c11] : memref<16xf32, #tpu.memory_space<smem>>
    %48 = vector.broadcast %47 : f32 to vector<8x128xf32>
    %49 = arith.mulf %46, %48 : vector<8x128xf32>
    %50 = arith.addf %38, %49 : vector<8x128xf32>
    %c0_5 = arith.constant 0 : index
    %c0_6 = arith.constant 0 : index
    %51 = vector.load %arg3[%c0_5, %c0_6] : memref<8x128xf32, #tpu.memory_space<vmem>>, vector<8x128xf32>
    tpu.vector_store %arg3[%c0_5, %c0_6], %50 {strides = array<i32>} : memref<8x128xf32, #tpu.memory_space<vmem>>, vector<8x128xf32>,
    return
  }
  func.func @transform_0(%arg0: i32, %arg1: memref<16xf32, #tpu.memory_space<smem>>) -> (i32, i32) {
    %c0_i32 = arith.constant 0 : i32
    %c0_i32_0 = arith.constant 0 : i32
    return %arg0, %c0_i32 : i32, i32
  }
  func.func @transform_1(%arg0: i32, %arg1: memref<16xf32, #tpu.memory_space<smem>>) -> (i32, i32) {
    %c0_i32 = arith.constant 0 : i32
    %c0_i32_0 = arith.constant 0 : i32
    return %arg0, %c0_i32 : i32, i32
  }
}

</mosaic_0001>

<llo_original>
// kernel: mlp_forward.1
$region0: #{mlp_forward.1}
  #allocation0 [shape = 'u32[]', space=smem, size = 0x4, offset = 0x4, fixed_abs, tag = 'smem constant byte address 0x4 - core index']
  #allocation1 [shape = 'u32[144,128]{1,0:T(1,128)}', space=vmem, size = 0x12000, scoped, tag = 'internal scratch']
  #allocation2 [shape = 's32[1]{0}', space=sflag, size = 0x4, scoped, tag = 'scoped memory for mlp_forward.1']
  #allocation3 [shape = 'u8[512]{0}', space=smem, size = 0x200, scoped, tag = 'prefetched SMEM operand 0']
  %s0 = inlined_call_operand.vmem [shape: f32[16], index: 0, kind: input, shape index: {}]
  %s1 = inlined_call_operand.vmem [shape: f32[8,128], index: 1, kind: input, shape index: {}]
  %s2 = inlined_call_operand.vmem [shape: f32[8,128], index: 2, kind: output, shape index: {}]
  %s3 = sld [smem:[#allocation0]]
  $region14: #{mlp_forward.1} parent=0
    _
  %s5 = ssub.s32 1, %s3
  %s6 = scalar_select 0, %s5, %s3
  %s7 = sshll.u32 %s0, 4
  %s8 = int_to_ptr.vmem [resolvable:$true] %s7
  %10 = dma.vmem_to_smem %s8, 16, [#allocation3], [#allocation2]
  %11 = dma.done [#allocation2], 16
  %12 = sfence
  // Predicated region
  $region2: #{mlp_forward.1} parent=0 // pred_check
    _
  $region3: #{mlp_forward.1} parent=0 // pred_check_branch
    %14 = sbr.rel (0) target = $region5
  $region4: #{mlp_forward.1} parent=0 // pred_region
    _
  $region5: #{mlp_forward.1} parent=0 // pred_fallthru
    _
  %v15 = vld [vmem:[%s1] sm:$0xff]
  %s16 = sld [smem:[#allocation3]]
  %v17 = vstv %s16
  %v18 = vmul.f32 %v15, %v17
  %s19 = sld [smem:[#allocation3 + $0x4]]
  %v20 = vstv %s19
  %v21 = vadd.f32 %v18, %v20
  %v22 = vmax.f32 %v21, 0.0
  %s23 = sld [smem:[#allocation3 + $0x8]]
  %v24 = vstv %s23
  %v25 = vmul.f32 %v22, %v24
  %s26 = sld [smem:[#allocation3 + $0xc]]
  %v27 = vstv %s26
  %v28 = vadd.f32 %v25, %v27
  %s29 = sld [smem:[#allocation3 + $0x1]]
  %v30 = vstv %s29
  %v31 = vmul.f32 %v15, %v30
  %s32 = sld [smem:[#allocation3 + $0x5]]
  %v33 = vstv %s32
  %v34 = vadd.f32 %v31, %v33
  %v35 = vmax.f32 %v34, 0.0
  %s36 = sld [smem:[#allocation3 + $0x9]]
  %v37 = vstv %s36
  %v38 = vmul.f32 %v35, %v37
  %v39 = vadd.f32 %v28, %v38
  %s40 = sld [smem:[#allocation3 + $0x2]]
  %v41 = vstv %s40
  %v42 = vmul.f32 %v15, %v41
  %s43 = sld [smem:[#allocation3 + $0x6]]
  %v44 = vstv %s43
  %v45 = vadd.f32 %v42, %v44
  %v46 = vmax.f32 %v45, 0.0
  %s47 = sld [smem:[#allocation3 + $0xa]]
  %v48 = vstv %s47
  %v49 = vmul.f32 %v46, %v48
  %v50 = vadd.f32 %v39, %v49
  %s51 = sld [smem:[#allocation3 + $0x3]]
  %v52 = vstv %s51
  %v53 = vmul.f32 %v15, %v52
  %s54 = sld [smem:[#allocation3 + $0x7]]
  %v55 = vstv %s54
  %v56 = vadd.f32 %v53, %v55
  %v57 = vmax.f32 %v56, 0.0
  %s58 = sld [smem:[#allocation3 + $0xb]]
  %v59 = vstv %s58
  %v60 = vmul.f32 %v57, %v59
  %v61 = vadd.f32 %v50, %v60
  %62 = vst [vmem:[%s2] sm:$0xff] %v61
  // Predicated region
  $region6: #{mlp_forward.1} parent=0 // pred_check
    _
  $region7: #{mlp_forward.1} parent=0 // pred_check_branch
    %64 = sbr.rel (0) target = $region9
  $region8: #{mlp_forward.1} parent=0 // pred_region
    _
  $region9: #{mlp_forward.1} parent=0 // pred_fallthru
    _
  // Predicated region
  $region10: #{mlp_forward.1} parent=0 // pred_check
    _
  $region11: #{mlp_forward.1} parent=0 // pred_check_branch
    %66 = sbr.rel (0) target = $region13
  $region12: #{mlp_forward.1} parent=0 // pred_region
    _
  $region13: #{mlp_forward.1} parent=0 // pred_fallthru
    _

</llo_original>
